<compile_context>
chip_gen: v6e
topology: v6e:2x2x1
jax: 0.10.0
libtpu: 0.0.40
codegen_flags: <defaults>
</compile_context>

<pallas_src>
import functools
import math

import jax
import jax.numpy as jnp
from jax.experimental import pallas as pl
from jax.experimental.pallas import tpu as pltpu


def _gcn_kernel(x_ref, w_ref, adj_ref, mask_ref, bias_ref, o_ref, *,
                batch, nodes, compute_dtype):
    """Single-invocation GCN forward.

    x_ref:    (B*N, C)   all batches flattened -> one big support matmul
    w_ref:    (C, D)     weight (no padding)
    adj_ref:  (N, N)
    mask_ref: (N, N)
    bias_ref: (1, D)
    o_ref:    (B*N, D)
    """
    cd = compute_dtype

    # (1) support = X @ W for ALL batches at once: (B*N, C) @ (C, D),
    #     f32 accumulation on the MXU, single cast to compute dtype.
    support = jnp.dot(x_ref[...].astype(cd), w_ref[...].astype(cd),
                      preferred_element_type=jnp.float32).astype(cd)

    # Masked adjacency, computed exactly once per call, in compute dtype
    # (bf16 multiply uses the v6e/v7x bf16 VALUs; pass compute_dtype=f32 on
    # v5e).  If adj/mask were constant across calls this product could be
    # hoisted out of the kernel entirely.
    a = adj_ref[...].astype(cd) * mask_ref[...].astype(cd)            # (N, N)

    # (2) Fuse the B per-batch (N,N)@(N,D) aggregations into ONE MXU matmul
    #     via a block-diagonal (B*N, B*N) adjacency.  B is small and static,
    #     so the Python block assembly is a handful of cheap concats.
    if batch == 1:
        a_bd = a
    else:
        zero_blk = jnp.zeros_like(a)
        a_bd = jnp.concatenate(
            [jnp.concatenate(
                [a if j == i else zero_blk for j in range(batch)], axis=1)
             for i in range(batch)], axis=0)                           # (B*N, B*N)

    out = jnp.dot(a_bd, support, preferred_element_type=jnp.float32)  # (B*N, D)

    # bias_ref is (1, D): the broadcast fuses into the vadd.
    o_ref[...] = (out + bias_ref[...]).astype(o_ref.dtype)


def graph_convolution(x, weight, adj, mask, bias, *, compute_dtype=jnp.bfloat16):
    """x: (B, N, C), weight: (C, D), adj/mask: (N, N), bias: (D,) -> (B, N, D)."""
    B, N, C = x.shape
    D = weight.shape[1]

    x_flat = x.reshape(B * N, C)      # contiguous reshape -> free
    bias2d = bias.reshape(1, D)       # metadata-only reshape

    kernel = functools.partial(_gcn_kernel, batch=B, nodes=N,
                               compute_dtype=compute_dtype)

    # Honest advisory cost (real executed MXU flops, un-padded bytes).
    flops = 2 * B * N * C * D + 2 * (B * N) * (B * N) * D
    bytes_accessed = 4 * (x_flat.size + weight.size + adj.size
                          + mask.size + bias2d.size + B * N * D)

    vmem_spec = pl.BlockSpec(memory_space=pltpu.MemorySpace.VMEM)
    out_flat = pl.pallas_call(
        kernel,
        out_shape=jax.ShapeDtypeStruct((B * N, D), x.dtype),
        in_specs=[vmem_spec] * 5,
        out_specs=vmem_spec,
        compiler_params=pltpu.CompilerParams(
            vmem_limit_bytes=32 * 1024 * 1024,
        ),
        cost_estimate=pl.CostEstimate(
            flops=flops, transcendentals=0, bytes_accessed=bytes_accessed),
    )(x_flat, weight, adj, mask, bias2d)

    return out_flat.reshape(B, N, D)


if __name__ == "__main__":
    # Small shapes consistent with the module's forward.
    B, N, C, D = 2, 16, 32, 32  # batch, num_nodes, in_features, out_features

    key = jax.random.PRNGKey(0)
    k_x, k_adj, k_w, k_b = jax.random.split(key, 4)

    # Deterministic parameter init, mirroring reset_parameters():
    #   weight, bias ~ U(-stdv, stdv) with stdv = 1/sqrt(out_features)
    #   mask = ones(num_nodes, num_nodes)
    stdv = 1.0 / math.sqrt(D)
    weight = jax.random.uniform(k_w, (C, D), jnp.float32, minval=-stdv, maxval=stdv)
    bias = jax.random.uniform(k_b, (D,), jnp.float32, minval=-stdv, maxval=stdv)
    mask = jnp.ones((N, N), jnp.float32)

    # Example inputs.
    x = jax.random.normal(k_x, (B, N, C), jnp.float32)
    adj = jax.random.uniform(k_adj, (N, N), jnp.float32)

    # Pure-JAX reference (same einsum semantics as the PyTorch forward).
    support_ref = jnp.einsum('bnc,cd->bnd', x, weight)
    out_ref = jnp.einsum('mn,bnd->bmd', adj * mask, support_ref) + bias

    # f32 compute path: exact-semantics check (tight tolerance).
    out_f32 = jax.block_until_ready(
        graph_convolution(x, weight, adj, mask, bias, compute_dtype=jnp.float32))
    assert out_f32.shape == (B, N, D)
    assert jnp.allclose(out_f32, out_ref, atol=1e-5, rtol=1e-5)

    # bf16 MXU fast path (v6e/v7x): f32 accumulation, loose tolerance.
    out_bf16 = jax.block_until_ready(
        graph_convolution(x, weight, adj, mask, bias, compute_dtype=jnp.bfloat16))
    assert out_bf16.shape == (B, N, D)
    assert jnp.allclose(out_bf16, out_ref, atol=5e-2, rtol=5e-2)

    print("KERNEL_OK")
</pallas_src>

<mosaic_0001>
module attributes {stable_mosaic.version = 11 : i64} {
  func.func @_gcn_kernel(%arg0: memref<32x32xf32, #tpu.memory_space<vmem>>, %arg1: memref<32x32xf32, #tpu.memory_space<vmem>>, %arg2: memref<16x16xf32, #tpu.memory_space<vmem>>, %arg3: memref<16x16xf32, #tpu.memory_space<vmem>>, %arg4: memref<1x32xf32, #tpu.memory_space<vmem>>, %arg5: memref<32x32xf32, #tpu.memory_space<vmem>>) attributes {dimension_semantics = [], scalar_prefetch = 0 : i64, scratch_operands = 0 : i64, tpu.core_type = #tpu.core_type<tc>} {
    %c0 = arith.constant 0 : index
    %c0_0 = arith.constant 0 : index
    %0 = vector.load %arg0[%c0, %c0_0] : memref<32x32xf32, #tpu.memory_space<vmem>>, vector<32x32xf32>
    %c0_1 = arith.constant 0 : index
    %c0_2 = arith.constant 0 : index
    %1 = vector.load %arg1[%c0_1, %c0_2] : memref<32x32xf32, #tpu.memory_space<vmem>>, vector<32x32xf32>
    %cst = arith.constant dense<0.000000e+00> : vector<32x32xf32>
    %2 = tpu.matmul %0, %1, %cst {dimension_numbers = #tpu.dot_dimension_numbers<[1], [0], [0], [1], [0, 0, 1, 1], [], []>} : vector<32x32xf32>, vector<32x32xf32>, vector<32x32xf32> -> vector<32x32xf32>
    %c0_3 = arith.constant 0 : index
    %c0_4 = arith.constant 0 : index
    %3 = vector.load %arg2[%c0_3, %c0_4] : memref<16x16xf32, #tpu.memory_space<vmem>>, vector<16x16xf32>
    %c0_5 = arith.constant 0 : index
    %c0_6 = arith.constant 0 : index
    %4 = vector.load %arg3[%c0_5, %c0_6] : memref<16x16xf32, #tpu.memory_space<vmem>>, vector<16x16xf32>
    %5 = arith.mulf %3, %4 : vector<16x16xf32>
    %cst_7 = arith.constant 0.000000e+00 : f32
    %6 = vector.broadcast %cst_7 : f32 to vector<16x16xf32>
    %7 = tpu.concatenate %5, %6 in 1 : vector<16x16xf32>, vector<16x16xf32> -> vector<16x32xf32>
    %8 = tpu.concatenate %6, %5 in 1 : vector<16x16xf32>, vector<16x16xf32> -> vector<16x32xf32>
    %9 = tpu.concatenate %7, %8 in 0 : vector<16x32xf32>, vector<16x32xf32> -> vector<32x32xf32>
    %cst_8 = arith.constant dense<0.000000e+00> : vector<32x32xf32>
    %10 = tpu.matmul %9, %2, %cst_8 {dimension_numbers = #tpu.dot_dimension_numbers<[1], [0], [0], [1], [0, 0, 1, 1], [], []>} : vector<32x32xf32>, vector<32x32xf32>, vector<32x32xf32> -> vector<32x32xf32>
    %c0_9 = arith.constant 0 : index
    %c0_10 = arith.constant 0 : index
    %11 = vector.load %arg4[%c0_9, %c0_10] : memref<1x32xf32, #tpu.memory_space<vmem>>, vector<1x32xf32>
    %12 = vector.broadcast %11 : vector<1x32xf32> to vector<32x32xf32>
    %13 = arith.addf %10, %12 : vector<32x32xf32>
    %c0_11 = arith.constant 0 : index
    %c0_12 = arith.constant 0 : index
    %14 = vector.load %arg5[%c0_11, %c0_12] : memref<32x32xf32, #tpu.memory_space<vmem>>, vector<32x32xf32>
    tpu.vector_store %arg5[%c0_11, %c0_12], %13 {strides = array<i32>} : memref<32x32xf32, #tpu.memory_space<vmem>>, vector<32x32xf32>,
    return
  }
}

</mosaic_0001>

<llo_original>
// kernel: tpu_custom_call.1
$region0: #{tpu_custom_call.1}
  #allocation0 [shape = 'u32[]', space=smem, size = 0x4, offset = 0x4, fixed_abs, tag = 'smem constant byte address 0x4 - core index']
  #allocation1 [shape = 'u32[144,128]{1,0:T(1,128)}', space=vmem, size = 0x12000, scoped, tag = 'internal scratch']
  %s0 = inlined_call_operand.hbm [shape: f32[32,32], index: 0, kind: input, shape index: {}]
  %s1 = inlined_call_operand.hbm [shape: f32[32,32], index: 1, kind: input, shape index: {}]
  %s2 = inlined_call_operand.hbm [shape: f32[16,16], index: 2, kind: input, shape index: {}]
  %s3 = inlined_call_operand.hbm [shape: f32[16,16], index: 3, kind: input, shape index: {}]
  %s4 = inlined_call_operand.vmem [shape: f32[1,32], index: 4, kind: input, shape index: {}]
  %s5 = inlined_call_operand.hbm [shape: f32[32,32], index: 5, kind: output, shape index: {}]
  %s6 = sld [smem:[#allocation0]]
  $region46: #{tpu_custom_call.1} parent=0
    _
  %s8 = ssub.s32 1, %s6
  %s9 = scalar_select 0, %s8, %s6
  $region1: #{tpu_custom_call.1} parent=0
    #allocation2 [shape = 'u8[16384]{0}', space=vmem, size = 0x4000, scoped, tag = 'input window, operand 0, single buffered']
    #allocation3 [shape = 's32[1]{0}', space=sflag, size = 0x4, scoped, tag = 'scoped memory for tpu_custom_call.1']
    #allocation4 [shape = 's32[1]{0}', space=sflag, size = 0x4, scoped, tag = 'scoped memory for tpu_custom_call.1']
    #allocation5 [shape = 'u8[16384]{0}', space=vmem, size = 0x4000, scoped, tag = 'input window, operand 1, single buffered']
    #allocation6 [shape = 's32[1]{0}', space=sflag, size = 0x4, scoped, tag = 'scoped memory for tpu_custom_call.1']
    #allocation7 [shape = 'u8[8192]{0}', space=vmem, size = 0x2000, scoped, tag = 'input window, operand 2, single buffered']
    #allocation8 [shape = 'u8[8192]{0}', space=vmem, size = 0x2000, scoped, tag = 'input window, operand 3, single buffered']
    #allocation9 [shape = 's32[1]{0}', space=sflag, size = 0x4, scoped, tag = 'scoped memory for tpu_custom_call.1']
    #allocation10 [shape = 'u8[16384]{0}', space=vmem, size = 0x4000, scoped, tag = 'output window, operand 0, single buffered']
    %10 = vsyncpa [#allocation3], 0
    %11 = vsyncpa [#allocation6], 0
    %12 = vsyncpa [#allocation9], 0
    %13 = vsyncpa [#allocation4], 0
    // Predicated region
    $region2: #{tpu_custom_call.1} parent=1 // pred_check
      _
    $region3: #{tpu_custom_call.1} parent=1 // pred_check_branch
      %15 = sbr.rel (0) target = $region5
    $region4: #{tpu_custom_call.1} parent=1 // pred_region
      %s17 = ssub.s32 512, 512
      %18 = vsyncadd [#allocation3], %s17
      %s19 = sshll.u32 [#allocation2], 4
      %s20 = int_to_ptr.vmem [resolvable:$true] %s19
      %25 = dma.hbm_to_vmem [thread:$0]  %s0, 512, %s20, [#allocation3], 128, 128, 8
    $region5: #{tpu_custom_call.1} parent=1 // pred_fallthru
      _
    // Predicated region
    $region6: #{tpu_custom_call.1} parent=1 // pred_check
      _
    $region7: #{tpu_custom_call.1} parent=1 // pred_check_branch
      %27 = sbr.rel (0) target = $region9
    $region8: #{tpu_custom_call.1} parent=1 // pred_region
      %s29 = ssub.s32 512, 512
      %30 = vsyncadd [#allocation6], %s29
      %s31 = sshll.u32 [#allocation5], 4
      %s32 = int_to_ptr.vmem [resolvable:$true] %s31
      %37 = dma.hbm_to_vmem [thread:$0]  %s1, 512, %s32, [#allocation6], 128, 128, 8
    $region9: #{tpu_custom_call.1} parent=1 // pred_fallthru
      _
    // Predicated region
    $region10: #{tpu_custom_call.1} parent=1 // pred_check
      _
    $region11: #{tpu_custom_call.1} parent=1 // pred_check_branch
      %39 = sbr.rel (0) target = $region13
    $region12: #{tpu_custom_call.1} parent=1 // pred_region
      %s41 = ssub.s32 256, 256
      %42 = vsyncadd [#allocation6], %s41
      %s43 = sshll.u32 [#allocation7], 4
      %s44 = int_to_ptr.vmem [resolvable:$true] %s43
      %49 = dma.hbm_to_vmem [thread:$0]  %s2, 256, %s44, [#allocation6], 128, 128, 8
    $region13: #{tpu_custom_call.1} parent=1 // pred_fallthru
      _
    // Predicated region
    $region14: #{tpu_custom_call.1} parent=1 // pred_check
      _
    $region15: #{tpu_custom_call.1} parent=1 // pred_check_branch
      %51 = sbr.rel (0) target = $region17
    $region16: #{tpu_custom_call.1} parent=1 // pred_region
      %s53 = ssub.s32 256, 256
      %54 = vsyncadd [#allocation9], %s53
      %s55 = sshll.u32 [#allocation8], 4
      %s56 = int_to_ptr.vmem [resolvable:$true] %s55
      %61 = dma.hbm_to_vmem [thread:$0]  %s3, 256, %s56, [#allocation9], 128, 128, 8
    $region17: #{tpu_custom_call.1} parent=1 // pred_fallthru
      _
    // Predicated region
    $region18: #{tpu_custom_call.1} parent=1 // pred_check
      _
    $region19: #{tpu_custom_call.1} parent=1 // pred_check_branch
      %63 = sbr.rel (0) target = $region21
    $region20: #{tpu_custom_call.1} parent=1 // pred_region
      _
    $region21: #{tpu_custom_call.1} parent=1 // pred_fallthru
      _
    // Predicated region
    $region22: #{tpu_custom_call.1} parent=1 // pred_check
      _
    $region23: #{tpu_custom_call.1} parent=1 // pred_check_branch
      %65 = sbr.rel (0) target = $region25
    $region24: #{tpu_custom_call.1} parent=1 // pred_region
      %66 = dma.done [#allocation3], 512
    $region25: #{tpu_custom_call.1} parent=1 // pred_fallthru
      _
    // Predicated region
    $region26: #{tpu_custom_call.1} parent=1 // pred_check
      _
    $region27: #{tpu_custom_call.1} parent=1 // pred_check_branch
      %68 = sbr.rel (0) target = $region29
    $region28: #{tpu_custom_call.1} parent=1 // pred_region
      %69 = dma.done [#allocation6], 512
    $region29: #{tpu_custom_call.1} parent=1 // pred_fallthru
      _
    // Predicated region
    $region30: #{tpu_custom_call.1} parent=1 // pred_check
      _
    $region31: #{tpu_custom_call.1} parent=1 // pred_check_branch
      %71 = sbr.rel (0) target = $region33
    $region32: #{tpu_custom_call.1} parent=1 // pred_region
      %72 = dma.done [#allocation6], 256
    $region33: #{tpu_custom_call.1} parent=1 // pred_fallthru
      _
    // Predicated region
    $region34: #{tpu_custom_call.1} parent=1 // pred_check
      _
    $region35: #{tpu_custom_call.1} parent=1 // pred_check_branch
      %74 = sbr.rel (0) target = $region37
    $region36: #{tpu_custom_call.1} parent=1 // pred_region
      %75 = dma.done [#allocation9], 256
    $region37: #{tpu_custom_call.1} parent=1 // pred_fallthru
      _
    %v76 = vld [vmem:[#allocation2] sm:$0xff]
    %v77 = vld [vmem:[#allocation2 + $0x8] sm:$0xff]
    %v78 = vld [vmem:[#allocation2 + $0x10] sm:$0xff]
    %v79 = vld [vmem:[#allocation2 + $0x18] sm:$0xff]
    %v80 = vld [vmem:[#allocation5] sm:$0xff]
    %v81 = vld [vmem:[#allocation5 + $0x8] sm:$0xff]
    %v82 = vld [vmem:[#allocation5 + $0x10] sm:$0xff]
    %v83 = vld [vmem:[#allocation5 + $0x18] sm:$0xff]
    %vm84 = vcmask 261120
    %v86 = vsel %vm84, %v76, 0
    %v89 = vsel %vm84, %v77, 0
    %v92 = vsel %vm84, %v78, 0
    %v95 = vsel %vm84, %v79, 0
    %97 = vmatprep.subr.mxu0 0.0
    %98 = vmatpush1.msra.mxu0 0.0
    %99 = vmatprep.subr.mxu0 0.0
    %100 = vmatpush1.msra.mxu0 0.0
    %101 = vmatprep.subr.mxu0 0.0
    %102 = vmatpush1.msra.mxu0 0.0
    %103 = vmatprep.subr.mxu0 0.0
    %104 = vmatpush1.msra.mxu0 0.0
    %105 = vmatprep.subr.mxu0 0.0
    %106 = vmatpush1.msra.mxu0 0.0
    %107 = vmatprep.subr.mxu0 0.0
    %108 = vmatpush1.msra.mxu0 0.0
    %109 = vmatprep.subr.mxu0 0.0
    %110 = vmatpush1.msra.mxu0 0.0
    %111 = vmatprep.subr.mxu0 0.0
    %112 = vmatpush1.msra.mxu0 0.0
    %113 = vmatprep.subr.mxu0 0.0
    %114 = vmatpush1.msra.mxu0 0.0
    %115 = vmatprep.subr.mxu0 0.0
    %116 = vmatpush1.msra.mxu0 0.0
    %117 = vmatprep.subr.mxu0 0.0
    %118 = vmatpush1.msra.mxu0 0.0
    %119 = vmatprep.subr.mxu0 0.0
    %120 = vmatpush1.msra.mxu0 0.0
    %121 = vmatprep.subr.mxu0 0.0
    %122 = vmatpush1.msra.mxu0 %v83
    %123 = vmatprep.subr.mxu0 0.0
    %124 = vmatpush1.msra.mxu0 %v82
    %125 = vmatprep.subr.mxu0 0.0
    %126 = vmatpush1.msra.mxu0 %v81
    %127 = vmatprep.subr.mxu0 0.0
    %128 = vmatpush1.msra.mxu0 %v80
    %129 = vmatprep.subr.mxu0 0.0
    %130 = vmatpush2.msra.mxu0 0.0
    %131 = vmatprep.subr.mxu0 0.0
    %132 = vmatpush2.msra.mxu0 0.0
    %133 = vmatprep.subr.mxu0 0.0
    %134 = vmatpush2.msra.mxu0 0.0
    %135 = vmatprep.subr.mxu0 0.0
    %136 = vmatpush2.msra.mxu0 0.0
    %137 = vmatprep.subr.mxu0 0.0
    %138 = vmatpush2.msra.mxu0 0.0
    %139 = vmatprep.subr.mxu0 0.0
    %140 = vmatpush2.msra.mxu0 0.0
    %141 = vmatprep.subr.mxu0 0.0
    %142 = vmatpush2.msra.mxu0 0.0
    %143 = vmatprep.subr.mxu0 0.0
    %144 = vmatpush2.msra.mxu0 0.0
    %145 = vmatprep.subr.mxu0 0.0
    %146 = vmatpush2.msra.mxu0 0.0
    %147 = vmatprep.subr.mxu0 0.0
    %148 = vmatpush2.msra.mxu0 0.0
    %149 = vmatprep.subr.mxu0 0.0
    %150 = vmatpush2.msra.mxu0 0.0
    %151 = vmatprep.subr.mxu0 0.0
    %152 = vmatpush2.msra.mxu0 0.0
    %153 = vmatprep.subr.mxu0 0.0
    %154 = vmatpush2.msra.mxu0 0.0
    %155 = vmatprep.subr.mxu0 0.0
    %156 = vmatpush2.msra.mxu0 0.0
    %157 = vmatprep.subr.mxu0 0.0
    %158 = vmatpush2.msra.mxu0 0.0
    %159 = vmatprep.subr.mxu0 0.0
    %160 = vmatpush2.msra.mxu0 0.0
    %161 = vmatprep.mubr.f32.mxu0 0.0
    %162 = vmatmul.mubr.f32.gmra.mxu0 %v86
    %v163 = vpop.f32.mrf.mxu0
    %v164 = vadd.f32 0.0, %v163
    %v165 = vpop.f32.mrf.mxu0
    %166 = vmatprep.mubr.f32.mxu0 0.0
    %167 = vmatmul.mubr.f32.gmra.mxu0 %v89
    %v168 = vpop.f32.mrf.mxu0
    %v169 = vadd.f32 0.0, %v168
    %v170 = vpop.f32.mrf.mxu0
    %171 = vmatprep.mubr.f32.mxu0 0.0
    %172 = vmatmul.mubr.f32.gmra.mxu0 %v92
    %v173 = vpop.f32.mrf.mxu0
    %v174 = vadd.f32 0.0, %v173
    %v175 = vpop.f32.mrf.mxu0
    %176 = vmatprep.mubr.f32.mxu0 0.0
    %177 = vmatmul.mubr.f32.gmra.mxu0 %v95
    %v178 = vpop.f32.mrf.mxu0
    %v179 = vadd.f32 0.0, %v178
    %v180 = vpop.f32.mrf.mxu0
    %181 = vdwg.mxu0
    %v182 = vld [vmem:[#allocation7] sm:$0xff]
    %v183 = vld [vmem:[#allocation7 + $0x8] sm:$0xff]
    %v184 = vld [vmem:[#allocation8] sm:$0xff]
    %v185 = vld [vmem:[#allocation8 + $0x8] sm:$0xff]
    %v186 = vmul.f32 %v182, %v184
    %v187 = vmul.f32 %v183, %v185
    %vm188 = vcmask 130048
    %v189 = vsel %vm188, %v186, 0.0
    %v190 = vsel %vm188, %v187, 0.0
    %193 = vrot.lane.b32.xlu0 %v186, 16
    %v194 = vpop.permute.xlu0 %193
    %195 = vrot.lane.b32.xlu0 %v187, 16
    %v196 = vpop.permute.xlu0 %195
    %v199 = vsel %vm188, 0.0, %v194
    %v200 = vsel %vm188, 0.0, %v196
    %v201 = vld [vmem:[%s4] sm:$0x1]
    %v203 = vlaneseq
    %v204 = vshrl.u32 %v203, 7
    %v205 = vsub.s32 0, %v204
    %v206 = vrot.slane %v201, %v205
    %v209 = vsel %vm84, %v189, 0
    %v212 = vsel %vm84, %v190, 0
    %v215 = vsel %vm84, %v199, 0
    %v218 = vsel %vm84, %v200, 0
    %220 = vmatprep.subr.mxu0 0.0
    %221 = vmatpush1.msra.mxu0 0.0
    %222 = vmatprep.subr.mxu0 0.0
    %223 = vmatpush1.msra.mxu0 0.0
    %224 = vmatprep.subr.mxu0 0.0
    %225 = vmatpush1.msra.mxu0 0.0
    %226 = vmatprep.subr.mxu0 0.0
    %227 = vmatpush1.msra.mxu0 0.0
    %228 = vmatprep.subr.mxu0 0.0
    %229 = vmatpush1.msra.mxu0 0.0
    %230 = vmatprep.subr.mxu0 0.0
    %231 = vmatpush1.msra.mxu0 0.0
    %232 = vmatprep.subr.mxu0 0.0
    %233 = vmatpush1.msra.mxu0 0.0
    %234 = vmatprep.subr.mxu0 0.0
    %235 = vmatpush1.msra.mxu0 0.0
    %236 = vmatprep.subr.mxu0 0.0
    %237 = vmatpush1.msra.mxu0 0.0
    %238 = vmatprep.subr.mxu0 0.0
    %239 = vmatpush1.msra.mxu0 0.0
    %240 = vmatprep.subr.mxu0 0.0
    %241 = vmatpush1.msra.mxu0 0.0
    %242 = vmatprep.subr.mxu0 0.0
    %243 = vmatpush1.msra.mxu0 0.0
    %244 = vmatprep.subr.mxu0 0.0
    %245 = vmatpush1.msra.mxu0 %v179
    %246 = vmatprep.subr.mxu0 0.0
    %247 = vmatpush1.msra.mxu0 %v174
    %248 = vmatprep.subr.mxu0 0.0
    %249 = vmatpush1.msra.mxu0 %v169
    %250 = vmatprep.subr.mxu0 0.0
    %251 = vmatpush1.msra.mxu0 %v164
    %252 = vmatprep.subr.mxu0 0.0
    %253 = vmatpush2.msra.mxu0 0.0
    %254 = vmatprep.subr.mxu0 0.0
    %255 = vmatpush2.msra.mxu0 0.0
    %256 = vmatprep.subr.mxu0 0.0
    %257 = vmatpush2.msra.mxu0 0.0
    %258 = vmatprep.subr.mxu0 0.0
    %259 = vmatpush2.msra.mxu0 0.0
    %260 = vmatprep.subr.mxu0 0.0
    %261 = vmatpush2.msra.mxu0 0.0
    %262 = vmatprep.subr.mxu0 0.0
    %263 = vmatpush2.msra.mxu0 0.0
    %264 = vmatprep.subr.mxu0 0.0
    %265 = vmatpush2.msra.mxu0 0.0
    %266 = vmatprep.subr.mxu0 0.0
    %267 = vmatpush2.msra.mxu0 0.0
    %268 = vmatprep.subr.mxu0 0.0
    %269 = vmatpush2.msra.mxu0 0.0
    %270 = vmatprep.subr.mxu0 0.0
    %271 = vmatpush2.msra.mxu0 0.0
    %272 = vmatprep.subr.mxu0 0.0
    %273 = vmatpush2.msra.mxu0 0.0
    %274 = vmatprep.subr.mxu0 0.0
    %275 = vmatpush2.msra.mxu0 0.0
    %276 = vmatprep.subr.mxu0 0.0
    %277 = vmatpush2.msra.mxu0 0.0
    %278 = vmatprep.subr.mxu0 0.0
    %279 = vmatpush2.msra.mxu0 0.0
    %280 = vmatprep.subr.mxu0 0.0
    %281 = vmatpush2.msra.mxu0 0.0
    %282 = vmatprep.subr.mxu0 0.0
    %283 = vmatpush2.msra.mxu0 0.0
    %284 = vmatprep.mubr.f32.mxu0 0.0
    %285 = vmatmul.mubr.f32.gmra.mxu0 %v209
    %v286 = vpop.f32.mrf.mxu0
    %v287 = vadd.f32 %v206, %v286
    %v288 = vpop.f32.mrf.mxu0
    %289 = vmatprep.mubr.f32.mxu0 0.0
    %290 = vmatmul.mubr.f32.gmra.mxu0 %v212
    %v291 = vpop.f32.mrf.mxu0
    %v292 = vadd.f32 %v206, %v291
    %v293 = vpop.f32.mrf.mxu0
    %294 = vmatprep.mubr.f32.mxu0 0.0
    %295 = vmatmul.mubr.f32.gmra.mxu0 %v215
    %v296 = vpop.f32.mrf.mxu0
    %v297 = vadd.f32 %v206, %v296
    %v298 = vpop.f32.mrf.mxu0
    %299 = vmatprep.mubr.f32.mxu0 0.0
    %300 = vmatmul.mubr.f32.gmra.mxu0 %v218
    %v301 = vpop.f32.mrf.mxu0
    %v302 = vadd.f32 %v206, %v301
    %v303 = vpop.f32.mrf.mxu0
    %304 = vdwg.mxu0
    %305 = vst.msk [vmem:[#allocation10] sm:$0xff] %vm84, %v287
    %306 = vst.msk [vmem:[#allocation10 + $0x8] sm:$0xff] %vm84, %v292
    %307 = vst.msk [vmem:[#allocation10 + $0x10] sm:$0xff] %vm84, %v297
    %308 = vst.msk [vmem:[#allocation10 + $0x18] sm:$0xff] %vm84, %v302
    // Predicated region
    $region38: #{tpu_custom_call.1} parent=1 // pred_check
      _
    $region39: #{tpu_custom_call.1} parent=1 // pred_check_branch
      %310 = sbr.rel (0) target = $region41
    $region40: #{tpu_custom_call.1} parent=1 // pred_region
      %s312 = ssub.s32 512, 512
      %313 = vsyncadd [#allocation4], %s312
      %s314 = sshll.u32 [#allocation10], 4
      %s315 = int_to_ptr.vmem [resolvable:$true] %s314
      %320 = dma.vmem_to_hbm [thread:$0]  %s315, 512, %s5, [#allocation4], 128, 128, 8
    $region41: #{tpu_custom_call.1} parent=1 // pred_fallthru
      _
    // Predicated region
    $region42: #{tpu_custom_call.1} parent=1 // pred_check
      _
    $region43: #{tpu_custom_call.1} parent=1 // pred_check_branch
      %322 = sbr.rel (0) target = $region45
    $region44: #{tpu_custom_call.1} parent=1 // pred_region
      %323 = dma.done [#allocation4], 512
    $region45: #{tpu_custom_call.1} parent=1 // pred_fallthru
      _
    %324 = vsyncpa [#allocation3], 1
    %325 = vsyncpa [#allocation6], 1
    %326 = vsyncpa [#allocation9], 1
    %327 = vsyncpa [#allocation4], 1

</llo_original>
